<compile_context>
chip_gen: v7x
topology: tpu7x:2x2x1
jax: 0.10.0
libtpu: 0.0.40
codegen_flags: <defaults>
</compile_context>

<pallas_src>
import math
from functools import partial

import jax
import jax.numpy as jnp
from jax import lax
from jax.experimental import pallas as pl
from jax.experimental.pallas import tpu as pltpu

LANE = 128            # padded lane width for every hidden / output dim
IN_FEATURES = 784
NUM_CLASSES = 10
NEG_LARGE = -1e30     # finite stand-in for -inf when masking padded logits
MAX_B_TILE = 2048     # f32 x tile: 2 bufs * 2048 * 784 * 4B ~= 12.5 MiB (fits v7x)


# ----------------------------------------------------------------------------
# Kernel
# ----------------------------------------------------------------------------

def _mlp_logsoftmax_kernel(x_ref, w0_ref, w1_ref, w2_ref, b2_ref,
                           w3_ref, w4_ref, b4_ref, o_ref):
    """Fused MLP tile: 5 matmuls + tanh + bias adds + masked log-softmax.

    x_ref:   (B_TILE, 784) f32 (cast to bf16 in-kernel)
    w*_ref:  lane-padded bf16 weights (constant index_map -> VMEM resident)
    b*_ref:  (1, 128) f32 lane-padded biases
    o_ref:   (B_TILE, 128) f32 lane-dense output (cols >= 10 are padding)
    """
    f32 = jnp.float32
    bf16 = jnp.bfloat16

    x = x_ref[...].astype(bf16)                                       # (Bt, 784)

    h = jnp.tanh(jnp.dot(x, w0_ref[...], preferred_element_type=f32))        # (Bt, 128)
    h = jnp.tanh(jnp.dot(h.astype(bf16), w1_ref[...],
                         preferred_element_type=f32))                         # (Bt, 128)
    h = jnp.dot(h.astype(bf16), w2_ref[...],
                preferred_element_type=f32) + b2_ref[...]                     # (Bt, 128)
    h = jnp.tanh(jnp.dot(h.astype(bf16), w3_ref[...],
                         preferred_element_type=f32))                         # (Bt, 128)
    logits = jnp.dot(h.astype(bf16), w4_ref[...],
                     preferred_element_type=f32) + b4_ref[...]                # (Bt, 128)

    # Exclude padded lanes (cols >= NUM_CLASSES) from the softmax reduction.
    lane = lax.broadcasted_iota(jnp.int32, logits.shape, 1)
    logits = jnp.where(lane < NUM_CLASSES, logits, NEG_LARGE)

    # LogSoftmax(dim=1), numerically stable, in f32.
    m = jnp.max(logits, axis=-1, keepdims=True)
    shifted = logits - m
    lse = jnp.log(jnp.sum(jnp.exp(shifted), axis=-1, keepdims=True))
    o_ref[...] = shifted - lse                                        # lane-dense store


# ----------------------------------------------------------------------------
# Wrapper
# ----------------------------------------------------------------------------

def _round_up(n, m):
    return ((n + m - 1) // m) * m


def _choose_b_tile(B):
    """Multiple of 16, <= MAX_B_TILE, and >= 2 grid steps when B is large
    enough (so v7x megacore sharding of the batch axis is actually used)."""
    b16 = _round_up(max(B, 1), 16)
    if b16 <= 16:
        return b16
    # Aim for an even number of grid steps, each tile <= MAX_B_TILE.
    n_pairs = max(1, -(-b16 // (2 * MAX_B_TILE)))
    tile = _round_up(-(-b16 // (2 * n_pairs)), 16)
    return min(tile, MAX_B_TILE)


@jax.jit
def linear_tanh_19_forward(x, padded_params):
    """x: (B, 1, 28, 28) float32 (NCHW). padded_params: from prepare_params().
    Returns (B, 10) log-probabilities (float32)."""
    B = x.shape[0]
    x2d = x.reshape(B, IN_FEATURES)          # free reshape, stays f32

    b_tile = _choose_b_tile(B)
    b_pad = _round_up(B, b_tile)
    if b_pad != B:
        x2d = jnp.pad(x2d, ((0, b_pad - B), (0, 0)))
    grid = (b_pad // b_tile,)

    w0p, w1p, w2p, b2p, w3p, w4p, b4p = padded_params

    def resident(shape):
        # Same block for every grid step -> DMA'd once, stays VMEM-resident.
        return pl.BlockSpec(shape, lambda i: (0, 0))

    out = pl.pallas_call(
        _mlp_logsoftmax_kernel,
        out_shape=jax.ShapeDtypeStruct((b_pad, LANE), jnp.float32),
        grid=grid,
        in_specs=[
            pl.BlockSpec((b_tile, IN_FEATURES), lambda i: (i, 0)),  # x tile (f32)
            resident((IN_FEATURES, LANE)),                          # w0
            resident((LANE, LANE)),                                 # w1
            resident((LANE, LANE)),                                 # w2
            resident((1, LANE)),                                    # b2
            resident((LANE, LANE)),                                 # w3
            resident((LANE, LANE)),                                 # w4
            resident((1, LANE)),                                    # b4
        ],
        out_specs=pl.BlockSpec((b_tile, LANE), lambda i: (i, 0)),
        compiler_params=pltpu.CompilerParams(
            dimension_semantics=("parallel",),      # megacore sharding on v7x
            vmem_limit_bytes=32 * 1024 * 1024,
        ),
    )(x2d, w0p, w1p, w2p, b2p, w3p, w4p, b4p)

    # TODO(synk): consumers that accept a padded (B, 128) buffer can skip this
    # slice and read columns [0, 10) directly.
    return out[:B, :NUM_CLASSES]


# ----------------------------------------------------------------------------
# Parameter construction & references
# ----------------------------------------------------------------------------

def _init_linear(key, in_f, out_f, bias):
    """nn.Linear-style init: U(-1/sqrt(in), 1/sqrt(in)); W pre-transposed."""
    kw, kb = jax.random.split(key)
    bound = 1.0 / math.sqrt(in_f)
    w = jax.random.uniform(kw, (in_f, out_f), jnp.float32, -bound, bound)
    if bias:
        b = jax.random.uniform(kb, (1, out_f), jnp.float32, -bound, bound)
        return w, b
    return w, None


def make_params(seed=0):
    keys = jax.random.split(jax.random.PRNGKey(seed), 5)
    w0, _ = _init_linear(keys[0], 784, 42, bias=False)
    w1, _ = _init_linear(keys[1], 42, 38, bias=False)
    w2, b2 = _init_linear(keys[2], 38, 20, bias=True)
    w3, _ = _init_linear(keys[3], 20, 11, bias=False)
    w4, b4 = _init_linear(keys[4], 11, 10, bias=True)
    return (w0, w1, w2, b2, w3, w4, b4)


def _pad2d(a, rows, cols, dtype):
    r, c = a.shape
    return jnp.pad(a, ((0, rows - r), (0, cols - c))).astype(dtype)


def prepare_params(params):
    """One-time: lane-pad and cast weights (done once, NOT per forward call)."""
    w0, w1, w2, b2, w3, w4, b4 = params
    bf16, f32 = jnp.bfloat16, jnp.float32
    w0p = _pad2d(w0, IN_FEATURES, LANE, bf16)   # (784, 128)
    w1p = _pad2d(w1, LANE, LANE, bf16)          # (128, 128)
    w2p = _pad2d(w2, LANE, LANE, bf16)
    b2p = _pad2d(b2, 1, LANE, f32)              # (1, 128)
    w3p = _pad2d(w3, LANE, LANE, bf16)
    w4p = _pad2d(w4, LANE, LANE, bf16)
    b4p = _pad2d(b4, 1, LANE, f32)
    return tuple(jax.device_put(p) for p in (w0p, w1p, w2p, b2p, w3p, w4p, b4p))


def _reference_forward_f32(x, params):
    """Exact f32 semantics of the original PyTorch module."""
    w0, w1, w2, b2, w3, w4, b4 = params
    h = x.reshape(x.shape[0], IN_FEATURES)
    h = jnp.tanh(h @ w0)
    h = jnp.tanh(h @ w1)
    h = h @ w2 + b2
    h = jnp.tanh(h @ w3)
    logits = h @ w4 + b4
    return jax.nn.log_softmax(logits, axis=-1)


def _reference_forward_bf16(x, params):
    """Mirror of the kernel's bf16-input / f32-accumulate numerics."""
    w0, w1, w2, b2, w3, w4, b4 = params
    bf16, f32 = jnp.bfloat16, jnp.float32
    dot = lambda a, b: jnp.dot(a.astype(bf16), b.astype(bf16),
                               preferred_element_type=f32)
    h = x.reshape(x.shape[0], IN_FEATURES)
    h = jnp.tanh(dot(h, w0))
    h = jnp.tanh(dot(h, w1))
    h = dot(h, w2) + b2
    h = jnp.tanh(dot(h, w3))
    logits = dot(h, w4) + b4
    return jax.nn.log_softmax(logits, axis=-1)


if __name__ == "__main__":
    key = jax.random.PRNGKey(0)
    x = jax.random.normal(key, (2, 1, 28, 28), jnp.float32)  # B=2, MNIST-shaped

    params = make_params(seed=0)
    padded_params = prepare_params(params)   # one-time, outside the forward

    out = linear_tanh_19_forward(x, padded_params)
    out = jax.block_until_ready(out)
    assert out.shape == (2, 10)

    # Tight check against a reference using identical bf16/f32 numerics.
    ref_bf16 = _reference_forward_bf16(x, params)
    assert jnp.allclose(out, ref_bf16, atol=2e-4, rtol=2e-4), (
        jnp.max(jnp.abs(out - ref_bf16)))

    # Looser check against the pure-f32 module semantics (bf16 rounding).
    ref_f32 = _reference_forward_f32(x, params)
    assert jnp.allclose(out, ref_f32, atol=5e-2, rtol=5e-2), (
        jnp.max(jnp.abs(out - ref_f32)))

    print("KERNEL_OK")
</pallas_src>

<mosaic_0001>
module attributes {stable_mosaic.version = 11 : i64} {
  func.func @_mlp_logsoftmax_kernel(%arg0: i32, %arg1: memref<16x784xf32, #tpu.memory_space<vmem>>, %arg2: memref<784x128xbf16, #tpu.memory_space<vmem>>, %arg3: memref<128x128xbf16, #tpu.memory_space<vmem>>, %arg4: memref<128x128xbf16, #tpu.memory_space<vmem>>, %arg5: memref<1x128xf32, #tpu.memory_space<vmem>>, %arg6: memref<128x128xbf16, #tpu.memory_space<vmem>>, %arg7: memref<128x128xbf16, #tpu.memory_space<vmem>>, %arg8: memref<1x128xf32, #tpu.memory_space<vmem>>, %arg9: memref<16x128xf32, #tpu.memory_space<vmem>>) attributes {dimension_semantics = [#tpu.dimension_semantics<parallel>], iteration_bounds = array<i64: 1>, scalar_prefetch = 0 : i64, scratch_operands = 0 : i64, tpu.core_type = #tpu.core_type<tc>, window_params = [{transform_indices = @transform_0, window_bounds = array<i64: 16, 784>}, {pipeline_mode = #tpu.pipeline_mode<synchronous>, transform_indices = @transform_1, window_bounds = array<i64: 784, 128>}, {pipeline_mode = #tpu.pipeline_mode<synchronous>, transform_indices = @transform_2, window_bounds = array<i64: 128, 128>}, {pipeline_mode = #tpu.pipeline_mode<synchronous>, transform_indices = @transform_3, window_bounds = array<i64: 128, 128>}, {pipeline_mode = #tpu.pipeline_mode<synchronous>, transform_indices = @transform_4, window_bounds = array<i64: 1, 128>}, {pipeline_mode = #tpu.pipeline_mode<synchronous>, transform_indices = @transform_5, window_bounds = array<i64: 128, 128>}, {pipeline_mode = #tpu.pipeline_mode<synchronous>, transform_indices = @transform_6, window_bounds = array<i64: 128, 128>}, {pipeline_mode = #tpu.pipeline_mode<synchronous>, transform_indices = @transform_7, window_bounds = array<i64: 1, 128>}, {transform_indices = @transform_8, window_bounds = array<i64: 16, 128>}]} {
    %c0 = arith.constant 0 : index
    %c0_0 = arith.constant 0 : index
    %0 = vector.load %arg1[%c0, %c0_0] : memref<16x784xf32, #tpu.memory_space<vmem>>, vector<16x784xf32>
    %1 = arith.truncf %0 : vector<16x784xf32> to vector<16x784xbf16>
    %c0_1 = arith.constant 0 : index
    %c0_2 = arith.constant 0 : index
    %2 = vector.load %arg2[%c0_1, %c0_2] : memref<784x128xbf16, #tpu.memory_space<vmem>>, vector<784x128xbf16>
    %cst = arith.constant dense<0.000000e+00> : vector<16x128xf32>
    %3 = tpu.matmul %1, %2, %cst {dimension_numbers = #tpu.dot_dimension_numbers<[1], [0], [0], [1], [0, 0, 1, 1], [], []>} : vector<16x784xbf16>, vector<784x128xbf16>, vector<16x128xf32> -> vector<16x128xf32>
    %4 = math.tanh %3 : vector<16x128xf32>
    %5 = arith.truncf %4 : vector<16x128xf32> to vector<16x128xbf16>
    %c0_3 = arith.constant 0 : index
    %c0_4 = arith.constant 0 : index
    %6 = vector.load %arg3[%c0_3, %c0_4] : memref<128x128xbf16, #tpu.memory_space<vmem>>, vector<128x128xbf16>
    %cst_5 = arith.constant dense<0.000000e+00> : vector<16x128xf32>
    %7 = tpu.matmul %5, %6, %cst_5 {dimension_numbers = #tpu.dot_dimension_numbers<[1], [0], [0], [1], [0, 0, 1, 1], [], []>} : vector<16x128xbf16>, vector<128x128xbf16>, vector<16x128xf32> -> vector<16x128xf32>
    %8 = math.tanh %7 : vector<16x128xf32>
    %9 = arith.truncf %8 : vector<16x128xf32> to vector<16x128xbf16>
    %c0_6 = arith.constant 0 : index
    %c0_7 = arith.constant 0 : index
    %10 = vector.load %arg4[%c0_6, %c0_7] : memref<128x128xbf16, #tpu.memory_space<vmem>>, vector<128x128xbf16>
    %cst_8 = arith.constant dense<0.000000e+00> : vector<16x128xf32>
    %11 = tpu.matmul %9, %10, %cst_8 {dimension_numbers = #tpu.dot_dimension_numbers<[1], [0], [0], [1], [0, 0, 1, 1], [], []>} : vector<16x128xbf16>, vector<128x128xbf16>, vector<16x128xf32> -> vector<16x128xf32>
    %c0_9 = arith.constant 0 : index
    %c0_10 = arith.constant 0 : index
    %12 = vector.load %arg5[%c0_9, %c0_10] : memref<1x128xf32, #tpu.memory_space<vmem>>, vector<1x128xf32>
    %13 = vector.broadcast %12 : vector<1x128xf32> to vector<16x128xf32>
    %14 = arith.addf %11, %13 : vector<16x128xf32>
    %15 = arith.truncf %14 : vector<16x128xf32> to vector<16x128xbf16>
    %c0_11 = arith.constant 0 : index
    %c0_12 = arith.constant 0 : index
    %16 = vector.load %arg6[%c0_11, %c0_12] : memref<128x128xbf16, #tpu.memory_space<vmem>>, vector<128x128xbf16>
    %cst_13 = arith.constant dense<0.000000e+00> : vector<16x128xf32>
    %17 = tpu.matmul %15, %16, %cst_13 {dimension_numbers = #tpu.dot_dimension_numbers<[1], [0], [0], [1], [0, 0, 1, 1], [], []>} : vector<16x128xbf16>, vector<128x128xbf16>, vector<16x128xf32> -> vector<16x128xf32>
    %18 = math.tanh %17 : vector<16x128xf32>
    %19 = arith.truncf %18 : vector<16x128xf32> to vector<16x128xbf16>
    %c0_14 = arith.constant 0 : index
    %c0_15 = arith.constant 0 : index
    %20 = vector.load %arg7[%c0_14, %c0_15] : memref<128x128xbf16, #tpu.memory_space<vmem>>, vector<128x128xbf16>
    %cst_16 = arith.constant dense<0.000000e+00> : vector<16x128xf32>
    %21 = tpu.matmul %19, %20, %cst_16 {dimension_numbers = #tpu.dot_dimension_numbers<[1], [0], [0], [1], [0, 0, 1, 1], [], []>} : vector<16x128xbf16>, vector<128x128xbf16>, vector<16x128xf32> -> vector<16x128xf32>
    %c0_17 = arith.constant 0 : index
    %c0_18 = arith.constant 0 : index
    %22 = vector.load %arg8[%c0_17, %c0_18] : memref<1x128xf32, #tpu.memory_space<vmem>>, vector<1x128xf32>
    %23 = vector.broadcast %22 : vector<1x128xf32> to vector<16x128xf32>
    %24 = arith.addf %21, %23 : vector<16x128xf32>
    %25 = tpu.iota {dimensions = array<i32: 1>} : vector<16x128xi32>
    %c10_i32 = arith.constant 10 : i32
    %26 = vector.broadcast %c10_i32 : i32 to vector<16x128xi32>
    %27 = arith.cmpi slt, %25, %26 : vector<16x128xi32>
    %cst_19 = arith.constant -1.000000e+30 : f32
    %28 = vector.broadcast %cst_19 : f32 to vector<16x128xf32>
    %29 = arith.select %27, %24, %28 : vector<16x128xi1>, vector<16x128xf32>
    %cst_20 = arith.constant dense<0xFF800000> : vector<16xf32>
    %30 = vector.multi_reduction <maximumf>, %29, %cst_20 [1] : vector<16x128xf32> to vector<16xf32>
    %31 = vector.shape_cast %30 : vector<16xf32> to vector<16x1xf32>
    %32 = vector.broadcast %31 : vector<16x1xf32> to vector<16x128xf32>
    %33 = arith.subf %29, %32 : vector<16x128xf32>
    %34 = math.exp %33 : vector<16x128xf32>
    %cst_21 = arith.constant dense<0.000000e+00> : vector<16xf32>
    %35 = vector.multi_reduction <add>, %34, %cst_21 [1] : vector<16x128xf32> to vector<16xf32>
    %36 = vector.shape_cast %35 : vector<16xf32> to vector<16x1xf32>
    %37 = math.log %36 : vector<16x1xf32>
    %38 = vector.broadcast %37 : vector<16x1xf32> to vector<16x128xf32>
    %39 = arith.subf %33, %38 : vector<16x128xf32>
    %c0_22 = arith.constant 0 : index
    %c0_23 = arith.constant 0 : index
    %40 = vector.load %arg9[%c0_22, %c0_23] : memref<16x128xf32, #tpu.memory_space<vmem>>, vector<16x128xf32>
    tpu.vector_store %arg9[%c0_22, %c0_23], %39 {strides = array<i32>} : memref<16x128xf32, #tpu.memory_space<vmem>>, vector<16x128xf32>,
    return
  }
  func.func @transform_0(%arg0: i32) -> (i32, i32) {
    %c0_i32 = arith.constant 0 : i32
    %c0_i32_0 = arith.constant 0 : i32
    return %arg0, %c0_i32 : i32, i32
  }
  func.func @transform_1(%arg0: i32) -> (i32, i32) {
    %c0_i32 = arith.constant 0 : i32
    %c0_i32_0 = arith.constant 0 : i32
    %c0_i32_1 = arith.constant 0 : i32
    return %c0_i32, %c0_i32_0 : i32, i32
  }
  func.func @transform_2(%arg0: i32) -> (i32, i32) {
    %c0_i32 = arith.constant 0 : i32
    %c0_i32_0 = arith.constant 0 : i32
    %c0_i32_1 = arith.constant 0 : i32
    return %c0_i32, %c0_i32_0 : i32, i32
  }
  func.func @transform_3(%arg0: i32) -> (i32, i32) {
    %c0_i32 = arith.constant 0 : i32
    %c0_i32_0 = arith.constant 0 : i32
    %c0_i32_1 = arith.constant 0 : i32
    return %c0_i32, %c0_i32_0 : i32, i32
  }
  func.func @transform_4(%arg0: i32) -> (i32, i32) {
    %c0_i32 = arith.constant 0 : i32
    %c0_i32_0 = arith.constant 0 : i32
    %c0_i32_1 = arith.constant 0 : i32
    return %c0_i32, %c0_i32_0 : i32, i32
  }
  func.func @transform_5(%arg0: i32) -> (i32, i32) {
    %c0_i32 = arith.constant 0 : i32
    %c0_i32_0 = arith.constant 0 : i32
    %c0_i32_1 = arith.constant 0 : i32
    return %c0_i32, %c0_i32_0 : i32, i32
  }
  func.func @transform_6(%arg0: i32) -> (i32, i32) {
    %c0_i32 = arith.constant 0 : i32
    %c0_i32_0 = arith.constant 0 : i32
    %c0_i32_1 = arith.constant 0 : i32
    return %c0_i32, %c0_i32_0 : i32, i32
  }
  func.func @transform_7(%arg0: i32) -> (i32, i32) {
    %c0_i32 = arith.constant 0 : i32
    %c0_i32_0 = arith.constant 0 : i32
    %c0_i32_1 = arith.constant 0 : i32
    return %c0_i32, %c0_i32_0 : i32, i32
  }
  func.func @transform_8(%arg0: i32) -> (i32, i32) {
    %c0_i32 = arith.constant 0 : i32
    %c0_i32_0 = arith.constant 0 : i32
    return %arg0, %c0_i32 : i32, i32
  }
}

</mosaic_0001>

<llo_original>
// kernel: linear_tanh_19_forward.1
$region0: #{linear_tanh_19_forward.1}
  #allocation0 [shape = 'u32[]', space=smem, size = 0x4, offset = 0x4, fixed_abs, tag = 'smem constant byte address 0x4 - core index']
  #allocation1 [shape = 'u32[144,128]{1,0:T(1,128)}', space=vmem, size = 0x12000, scoped, tag = 'internal scratch']
  %s0 = inlined_call_operand.vmem [shape: f32[16,784], index: 0, kind: input, shape index: {}]
  %s1 = inlined_call_operand.hbm [shape: bf16[784,128], index: 1, kind: input, shape index: {}]
  %s2 = inlined_call_operand.vmem [shape: bf16[128,128], index: 2, kind: input, shape index: {}]
  %s3 = inlined_call_operand.vmem [shape: bf16[128,128], index: 3, kind: input, shape index: {}]
  %s4 = inlined_call_operand.vmem [shape: f32[1,128], index: 4, kind: input, shape index: {}]
  %s5 = inlined_call_operand.vmem [shape: bf16[128,128], index: 5, kind: input, shape index: {}]
  %s6 = inlined_call_operand.vmem [shape: bf16[128,128], index: 6, kind: input, shape index: {}]
  %s7 = inlined_call_operand.vmem [shape: f32[1,128], index: 7, kind: input, shape index: {}]
  %s8 = inlined_call_operand.vmem [shape: f32[16,128], index: 8, kind: output, shape index: {}]
  %s9 = sld [smem:[#allocation0]]
  $region46: #{linear_tanh_19_forward.1} parent=0
    _
  %s11 = ssub.s32 1, %s9
  %s12 = scalar_select 0, %s11, %s9
  $region1: #{linear_tanh_19_forward.1} parent=0
    #allocation2 [shape = 'u8[200704]{0}', space=vmem, size = 0x31000, scoped, tag = 'input window, operand 1, single buffered']
    #allocation3 [shape = 's32[1]{0}', space=sflag, size = 0x4, scoped, tag = 'scoped memory for linear_tanh_19_forward.1']
    %13 = vsyncpa [#allocation3], 0
    // Predicated region
    $region2: #{linear_tanh_19_forward.1} parent=1 // pred_check
      _
    $region3: #{linear_tanh_19_forward.1} parent=1 // pred_check_branch
      %15 = sbr.rel (0) target = $region5
    $region4: #{linear_tanh_19_forward.1} parent=1 // pred_region
      _
    $region5: #{linear_tanh_19_forward.1} parent=1 // pred_fallthru
      _
    // Predicated region
    $region6: #{linear_tanh_19_forward.1} parent=1 // pred_check
      _
    $region7: #{linear_tanh_19_forward.1} parent=1 // pred_check_branch
      %17 = sbr.rel (0) target = $region9
    $region8: #{linear_tanh_19_forward.1} parent=1 // pred_region
      %s19 = ssub.s32 6272, 6272
      %20 = vsyncadd [#allocation3], %s19
      %s21 = sshll.u32 [#allocation2], 4
      %s22 = int_to_ptr.vmem [resolvable:$true] %s21
      %27 = dma.hbm_to_vmem [thread:$0]  %s1, 6272, %s22, [#allocation3], 64, 64, 4
    $region9: #{linear_tanh_19_forward.1} parent=1 // pred_fallthru
      _
    // Predicated region
    $region10: #{linear_tanh_19_forward.1} parent=1 // pred_check
      _
    $region11: #{linear_tanh_19_forward.1} parent=1 // pred_check_branch
      %29 = sbr.rel (0) target = $region13
    $region12: #{linear_tanh_19_forward.1} parent=1 // pred_region
      _
    $region13: #{linear_tanh_19_forward.1} parent=1 // pred_fallthru
      _
    // Predicated region
    $region14: #{linear_tanh_19_forward.1} parent=1 // pred_check
      _
    $region15: #{linear_tanh_19_forward.1} parent=1 // pred_check_branch
      %31 = sbr.rel (0) target = $region17
    $region16: #{linear_tanh_19_forward.1} parent=1 // pred_region
      _
    $region17: #{linear_tanh_19_forward.1} parent=1 // pred_fallthru
      _
    // Predicated region
    $region18: #{linear_tanh_19_forward.1} parent=1 // pred_check
      _
    $region19: #{linear_tanh_19_forward.1} parent=1 // pred_check_branch
      %33 = sbr.rel (0) target = $region21
    $region20: #{linear_tanh_19_forward.1} parent=1 // pred_region
      _
    $region21: #{linear_tanh_19_forward.1} parent=1 // pred_fallthru
      _
    // Predicated region
    $region22: #{linear_tanh_19_forward.1} parent=1 // pred_check
      _
    $region23: #{linear_tanh_19_forward.1} parent=1 // pred_check_branch
      %35 = sbr.rel (0) target = $region25
    $region24: #{linear_tanh_19_forward.1} parent=1 // pred_region
      _
    $region25: #{linear_tanh_19_forward.1} parent=1 // pred_fallthru
      _
    // Predicated region
    $region26: #{linear_tanh_19_forward.1} parent=1 // pred_check
      _
    $region27: #{linear_tanh_19_forward.1} parent=1 // pred_check_branch
      %37 = sbr.rel (0) target = $region29
    $region28: #{linear_tanh_19_forward.1} parent=1 // pred_region
      _
    $region29: #{linear_tanh_19_forward.1} parent=1 // pred_fallthru
      _
    // Predicated region
    $region30: #{linear_tanh_19_forward.1} parent=1 // pred_check
      _
    $region31: #{linear_tanh_19_forward.1} parent=1 // pred_check_branch
      %39 = sbr.rel (0) target = $region33
    $region32: #{linear_tanh_19_forward.1} parent=1 // pred_region
      _
    $region33: #{linear_tanh_19_forward.1} parent=1 // pred_fallthru
      _
    // Predicated region
    $region34: #{linear_tanh_19_forward.1} parent=1 // pred_check
      _
    $region35: #{linear_tanh_19_forward.1} parent=1 // pred_check_branch
      %41 = sbr.rel (0) target = $region37
    $region36: #{linear_tanh_19_forward.1} parent=1 // pred_region
      %42 = dma.done [#allocation3], 6272
    $region37: #{linear_tanh_19_forward.1} parent=1 // pred_fallthru
      _
    %v44 = vld [vmem:[%s0] sm:$0xff]
    %v45 = vld [vmem:[%s0 + $0x8] sm:$0xff]
    %v46 = vld [vmem:[%s0 + $0x10] sm:$0xff]
    %v47 = vld [vmem:[%s0 + $0x18] sm:$0xff]
    %v48 = vld [vmem:[%s0 + $0x20] sm:$0xff]
    %v49 = vld [vmem:[%s0 + $0x28] sm:$0xff]
    %v50 = vld [vmem:[%s0 + $0x30] sm:$0xff]
    %v51 = vld [vmem:[%s0 + $0x38] sm:$0xff]
    %v52 = vld [vmem:[%s0 + $0x40] sm:$0xff]
    %v53 = vld [vmem:[%s0 + $0x48] sm:$0xff]
    %v54 = vld [vmem:[%s0 + $0x50] sm:$0xff]
    %v55 = vld [vmem:[%s0 + $0x58] sm:$0xff]
    %v56 = vld [vmem:[%s0 + $0x60] sm:$0xff]
    %v57 = vld [vmem:[%s0 + $0x68] sm:$0xff]
    %v58 = vpack.c.bf16 %v51, %v44
    %v59 = vpack.c.bf16 %v52, %v45
    %v60 = vpack.c.bf16 %v53, %v46
    %v61 = vpack.c.bf16 %v54, %v47
    %v62 = vpack.c.bf16 %v55, %v48
    %v63 = vpack.c.bf16 %v56, %v49
    %v64 = vpack.c.bf16 %v57, %v50
    %v65 = vld [vmem:[#allocation2] sm:$0xf]
    %v66 = vld [vmem:[#allocation2 + $0x4] sm:$0xf]
    %v67 = vld [vmem:[#allocation2 + $0x8] sm:$0xf]
    %v68 = vld [vmem:[#allocation2 + $0xc] sm:$0xf]
    %v69 = vld [vmem:[#allocation2 + $0x10] sm:$0xf]
    %v70 = vld [vmem:[#allocation2 + $0x14] sm:$0xf]
    %v71 = vld [vmem:[#allocation2 + $0x18] sm:$0xf]
    %v72 = vld [vmem:[#allocation2 + $0x1c] sm:$0xf]
    %v73 = vld [vmem:[#allocation2 + $0x20] sm:$0xf]
    %v74 = vld [vmem:[#allocation2 + $0x24] sm:$0xf]
    %v75 = vld [vmem:[#allocation2 + $0x28] sm:$0xf]
    %v76 = vld [vmem:[#allocation2 + $0x2c] sm:$0xf]
    %v77 = vld [vmem:[#allocation2 + $0x30] sm:$0xf]
    %v78 = vld [vmem:[#allocation2 + $0x34] sm:$0xf]
    %v79 = vld [vmem:[#allocation2 + $0x38] sm:$0xf]
    %v80 = vld [vmem:[#allocation2 + $0x3c] sm:$0xf]
    %v81 = vld [vmem:[#allocation2 + $0x40] sm:$0xf]
    %v82 = vld [vmem:[#allocation2 + $0x44] sm:$0xf]
    %v83 = vld [vmem:[#allocation2 + $0x48] sm:$0xf]
    %v84 = vld [vmem:[#allocation2 + $0x4c] sm:$0xf]
    %v85 = vld [vmem:[#allocation2 + $0x50] sm:$0xf]
    %v86 = vld [vmem:[#allocation2 + $0x54] sm:$0xf]
    %v87 = vld [vmem:[#allocation2 + $0x58] sm:$0xf]
    %v88 = vld [vmem:[#allocation2 + $0x5c] sm:$0xf]
    %v89 = vld [vmem:[#allocation2 + $0x60] sm:$0xf]
    %v90 = vld [vmem:[#allocation2 + $0x64] sm:$0xf]
    %v91 = vld [vmem:[#allocation2 + $0x68] sm:$0xf]
    %v92 = vld [vmem:[#allocation2 + $0x6c] sm:$0xf]
    %v93 = vld [vmem:[#allocation2 + $0x70] sm:$0xf]
    %v94 = vld [vmem:[#allocation2 + $0x74] sm:$0xf]
    %v95 = vld [vmem:[#allocation2 + $0x78] sm:$0xf]
    %v96 = vld [vmem:[#allocation2 + $0x7c] sm:$0xf]
    %v97 = vld [vmem:[#allocation2 + $0x80] sm:$0xf]
    %v98 = vld [vmem:[#allocation2 + $0x84] sm:$0xf]
    %v99 = vld [vmem:[#allocation2 + $0x88] sm:$0xf]
    %v100 = vld [vmem:[#allocation2 + $0x8c] sm:$0xf]
    %v101 = vld [vmem:[#allocation2 + $0x90] sm:$0xf]
    %v102 = vld [vmem:[#allocation2 + $0x94] sm:$0xf]
    %v103 = vld [vmem:[#allocation2 + $0x98] sm:$0xf]
    %v104 = vld [vmem:[#allocation2 + $0x9c] sm:$0xf]
    %v105 = vld [vmem:[#allocation2 + $0xa0] sm:$0xf]
    %v106 = vld [vmem:[#allocation2 + $0xa4] sm:$0xf]
    %v107 = vld [vmem:[#allocation2 + $0xa8] sm:$0xf]
    %v108 = vld [vmem:[#allocation2 + $0xac] sm:$0xf]
    %v109 = vld [vmem:[#allocation2 + $0xb0] sm:$0xf]
    %v110 = vld [vmem:[#allocation2 + $0xb4] sm:$0xf]
    %v111 = vld [vmem:[#allocation2 + $0xb8] sm:$0xf]
    %v112 = vld [vmem:[#allocation2 + $0xbc] sm:$0xf]
    %v113 = vld [vmem:[#allocation2 + $0xc0] sm:$0xf]
    %v114 = vld [vmem:[#allocation2 + $0xc4] sm:$0xf]
    %v115 = vld [vmem:[#allocation2 + $0xc8] sm:$0xf]
    %v116 = vld [vmem:[#allocation2 + $0xcc] sm:$0xf]
    %v117 = vld [vmem:[#allocation2 + $0xd0] sm:$0xf]
    %v118 = vld [vmem:[#allocation2 + $0xd4] sm:$0xf]
    %v119 = vld [vmem:[#allocation2 + $0xd8] sm:$0xf]
    %v120 = vld [vmem:[#allocation2 + $0xdc] sm:$0xf]
    %v121 = vld [vmem:[#allocation2 + $0xe0] sm:$0xf]
    %v122 = vld [vmem:[#allocation2 + $0xe4] sm:$0xf]
    %v123 = vld [vmem:[#allocation2 + $0xe8] sm:$0xf]
    %v124 = vld [vmem:[#allocation2 + $0xec] sm:$0xf]
    %v125 = vld [vmem:[#allocation2 + $0xf0] sm:$0xf]
    %v126 = vld [vmem:[#allocation2 + $0xf4] sm:$0xf]
    %v127 = vld [vmem:[#allocation2 + $0xf8] sm:$0xf]
    %v128 = vld [vmem:[#allocation2 + $0xfc] sm:$0xf]
    %v129 = vld [vmem:[#allocation2 + $0x100] sm:$0xf]
    %v130 = vld [vmem:[#allocation2 + $0x104] sm:$0xf]
    %v131 = vld [vmem:[#allocation2 + $0x108] sm:$0xf]
    %v132 = vld [vmem:[#allocation2 + $0x10c] sm:$0xf]
    %v133 = vld [vmem:[#allocation2 + $0x110] sm:$0xf]
    %v134 = vld [vmem:[#allocation2 + $0x114] sm:$0xf]
    %v135 = vld [vmem:[#allocation2 + $0x118] sm:$0xf]
    %v136 = vld [vmem:[#allocation2 + $0x11c] sm:$0xf]
    %v137 = vld [vmem:[#allocation2 + $0x120] sm:$0xf]
    %v138 = vld [vmem:[#allocation2 + $0x124] sm:$0xf]
    %v139 = vld [vmem:[#allocation2 + $0x128] sm:$0xf]
    %v140 = vld [vmem:[#allocation2 + $0x12c] sm:$0xf]
    %v141 = vld [vmem:[#allocation2 + $0x130] sm:$0xf]
    %v142 = vld [vmem:[#allocation2 + $0x134] sm:$0xf]
    %v143 = vld [vmem:[#allocation2 + $0x138] sm:$0xf]
    %v144 = vld [vmem:[#allocation2 + $0x13c] sm:$0xf]
    %v145 = vld [vmem:[#allocation2 + $0x140] sm:$0xf]
    %v146 = vld [vmem:[#allocation2 + $0x144] sm:$0xf]
    %v147 = vld [vmem:[#allocation2 + $0x148] sm:$0xf]
    %v148 = vld [vmem:[#allocation2 + $0x14c] sm:$0xf]
    %v149 = vld [vmem:[#allocation2 + $0x150] sm:$0xf]
    %v150 = vld [vmem:[#allocation2 + $0x154] sm:$0xf]
    %v151 = vld [vmem:[#allocation2 + $0x158] sm:$0xf]
    %v152 = vld [vmem:[#allocation2 + $0x15c] sm:$0xf]
    %v153 = vld [vmem:[#allocation2 + $0x160] sm:$0xf]
    %v154 = vld [vmem:[#allocation2 + $0x164] sm:$0xf]
    %v155 = vld [vmem:[#allocation2 + $0x168] sm:$0xf]
    %v156 = vld [vmem:[#allocation2 + $0x16c] sm:$0xf]
    %v157 = vld [vmem:[#allocation2 + $0x170] sm:$0xf]
    %v158 = vld [vmem:[#allocation2 + $0x174] sm:$0xf]
    %v159 = vld [vmem:[#allocation2 + $0x178] sm:$0xf]
    %v160 = vld [vmem:[#allocation2 + $0x17c] sm:$0xf]
    %v161 = vld [vmem:[#allocation2 + $0x180] sm:$0xf]
    %v162 = vld [vmem:[#allocation2 + $0x184] sm:$0xf]
    %v261 = vunpack.c.l.b16 %v65
    %v262 = vunpack.c.l.b16 %v66
    %v263 = vunpack.c.l.b16 %v67
    %v264 = vunpack.c.l.b16 %v68
    %v265 = vunpack.c.l.b16 %v69
    %v266 = vunpack.c.l.b16 %v70
    %v267 = vunpack.c.l.b16 %v71
    %v268 = vunpack.c.l.b16 %v72
    %v269 = vunpack.c.l.b16 %v73
    %v270 = vunpack.c.l.b16 %v74
    %v271 = vunpack.c.l.b16 %v75
    %v272 = vunpack.c.l.b16 %v76
    %v273 = vunpack.c.l.b16 %v77
    %v274 = vunpack.c.l.b16 %v78
    %v275 = vunpack.c.l.b16 %v79
    %v276 = vunpack.c.l.b16 %v80
    %v277 = vunpack.c.l.b16 %v81
    %v278 = vunpack.c.l.b16 %v82
    %v279 = vunpack.c.l.b16 %v83
    %v280 = vunpack.c.l.b16 %v84
    %v281 = vunpack.c.l.b16 %v85
    %v282 = vunpack.c.l.b16 %v86
    %v283 = vunpack.c.l.b16 %v87
    %v284 = vunpack.c.l.b16 %v88
    %v285 = vunpack.c.l.b16 %v89
    %v286 = vunpack.c.l.b16 %v90
    %v287 = vunpack.c.l.b16 %v91
    %v288 = vunpack.c.l.b16 %v92
    %v289 = vunpack.c.l.b16 %v93
    %v290 = vunpack.c.l.b16 %v94
    %v291 = vunpack.c.l.b16 %v95
    %v292 = vunpack.c.l.b16 %v96
    %v293 = vunpack.c.l.b16 %v97
    %v294 = vunpack.c.l.b16 %v98
    %v295 = vunpack.c.l.b16 %v99
    %v296 = vunpack.c.l.b16 %v100
    %v297 = vunpack.c.l.b16 %v101
    %v298 = vunpack.c.l.b16 %v102
    %v299 = vunpack.c.l.b16 %v103
    %v300 = vunpack.c.l.b16 %v104
    %v301 = vunpack.c.l.b16 %v105
    %v302 = vunpack.c.l.b16 %v106
    %v303 = vunpack.c.l.b16 %v107
    %v304 = vunpack.c.l.b16 %v108
    %v305 = vunpack.c.l.b16 %v109
    %v306 = vunpack.c.l.b16 %v110
    %v307 = vunpack.c.l.b16 %v111
    %v308 = vunpack.c.l.b16 %v112
    %v309 = vunpack.c.l.b16 %v113
    %v310 = vunpack.c.l.b16 %v114
    %v311 = vunpack.c.l.b16 %v115
    %v312 = vunpack.c.l.b16 %v116
    %v313 = vunpack.c.l.b16 %v117
    %v314 = vunpack.c.l.b16 %v118
    %v315 = vunpack.c.l.b16 %v119
    %v316 = vunpack.c.l.b16 %v120
    %v317 = vunpack.c.l.b16 %v121
    %v318 = vunpack.c.l.b16 %v122
    %v319 = vunpack.c.l.b16 %v123
    %v320 = vunpack.c.l.b16 %v124
    %v321 = vunpack.c.l.b16 %v125
    %v322 = vunpack.c.l.b16 %v126
    %v323 = vunpack.c.l.b16 %v127
    %v324 = vunpack.c.l.b16 %v128
    %v325 = vunpack.c.l.b16 %v129
    %v326 = vunpack.c.l.b16 %v130
    %v327 = vunpack.c.l.b16 %v131
    %v328 = vunpack.c.l.b16 %v132
    %v329 = vunpack.c.l.b16 %v133
    %v330 = vunpack.c.l.b16 %v134
    %v331 = vunpack.c.l.b16 %v135
    %v332 = vunpack.c.l.b16 %v136
    %v333 = vunpack.c.l.b16 %v137
    %v334 = vunpack.c.l.b16 %v138
    %v335 = vunpack.c.l.b16 %v139
    %v336 = vunpack.c.l.b16 %v140
    %v337 = vunpack.c.l.b16 %v141
    %v338 = vunpack.c.l.b16 %v142
    %v339 = vunpack.c.l.b16 %v143
    %v340 = vunpack.c.l.b16 %v144
    %v341 = vunpack.c.l.b16 %v145
    %v342 = vunpack.c.l.b16 %v146
    %v343 = vunpack.c.l.b16 %v147
    %v344 = vunpack.c.l.b16 %v148
    %v345 = vunpack.c.l.b16 %v149
    %v346 = vunpack.c.l.b16 %v150
    %v347 = vunpack.c.l.b16 %v151
    %v348 = vunpack.c.l.b16 %v152
    %v349 = vunpack.c.l.b16 %v153
    %v350 = vunpack.c.l.b16 %v154
    %v351 = vunpack.c.l.b16 %v155
    %v352 = vunpack.c.l.b16 %v156
    %v353 = vunpack.c.l.b16 %v157
    %v354 = vunpack.c.l.b16 %v158
    %v355 = vunpack.c.l.b16 %v159
    %v356 = vunpack.c.l.b16 %v160
    %v357 = vunpack.c.l.b16 %v161
    %v358 = vunpack.c.l.b16 %v162
    %v359 = vpack.c.b16 %v262, %v261
    %v360 = vpack.c.b16 %v264, %v263
    %v361 = vpack.c.b16 %v266, %v265
    %v362 = vpack.c.b16 %v268, %v267
    %v363 = vpack.c.b16 %v270, %v269
    %v364 = vpack.c.b16 %v272, %v271
    %v365 = vpack.c.b16 %v274, %v273
    %v366 = vpack.c.b16 %v276, %v275
    %v367 = vpack.c.b16 %v278, %v277
    %v368 = vpack.c.b16 %v280, %v279
    %v369 = vpack.c.b16 %v282, %v281
    %v370 = vpack.c.b16 %v284, %v283
    %v371 = vpack.c.b16 %v286, %v285
    %v372 = vpack.c.b16 %v288, %v287
    %v373 = vpack.c.b16 %v290, %v289
    %v374 = vpack.c.b16 %v292, %v291
    %v375 = vpack.c.b16 %v294, %v293
    %v376 = vpack.c.b16 %v296, %v295
    %v377 = vpack.c.b16 %v298, %v297
    %v378 = vpack.c.b16 %v300, %v299
    %v379 = vpack.c.b16 %v302, %v301
    %v380 = vpack.c.b16 %v304, %v303
    %v381 = vpack.c.b16 %v306, %v305
    %v382 = vpack.c.b16 %v308, %v307
    %v383 = vpack.c.b16 %v310, %v309
    %v384 = vpack.c.b16 %v312, %v311
    %v385 = vpack.c.b16 %v314, %v313
    %v386 = vpack.c.b16 %v316, %v315
    %v387 = vpack.c.b16 %v318, %v317
    %v388 = vpack.c.b16 %v320, %v319
    %v389 = vpack.c.b16 %v322, %v321
    %v390 = vpack.c.b16 %v324, %v323
    %v391 = vpack.c.b16 %v326, %v325
    %v392 = vpack.c.b16 %v328, %v327
    %v393 = vpack.c.b16 %v330, %v329
    %v394 = vpack.c.b16 %v332, %v331
    %v395 = vpack.c.b16 %v334, %v333
    %v396 = vpack.c.b16 %v336, %v335
    %v397 = vpack.c.b16 %v338, %v337
    %v398 = vpack.c.b16 %v340, %v339
    %v399 = vpack.c.b16 %v342, %v341
    %v400 = vpack.c.b16 %v344, %v343
    %v401 = vpack.c.b16 %v346, %v345
    %v402 = vpack.c.b16 %v348, %v347
    %v403 = vpack.c.b16 %v350, %v349
    %v404 = vpack.c.b16 %v352, %v351
    %v405 = vpack.c.b16 %v354, %v353
    %v406 = vpack.c.b16 %v356, %v355
    %v407 = vpack.c.b16 %v358, %v357
    %vm457 = vcmask 130048
    %v459 = vsel %vm457, %v64, 0
    %461 = vmatprep.subr.bf16.mxu0 0
    %462 = vmatpush1.bf16.msra.mxu0 %v359
    %463 = vmatprep.subr.bf16.mxu0 0
    %464 = vmatpush1.bf16.msra.mxu0 %v360
    %465 = vmatprep.subr.bf16.mxu0 0
    %466 = vmatpush1.bf16.msra.mxu0 %v361
    %467 = vmatprep.subr.bf16.mxu0 0
    %468 = vmatpush1.bf16.msra.mxu0 %v362
    %469 = vmatprep.subr.bf16.mxu0 0
    %470 = vmatpush1.bf16.msra.mxu0 %v363
    %471 = vmatprep.subr.bf16.mxu0 0
    %472 = vmatpush1.bf16.msra.mxu0 %v364
    %473 = vmatprep.subr.bf16.mxu0 0
    %474 = vmatpush1.bf16.msra.mxu0 %v365
    %475 = vmatprep.subr.bf16.mxu0 0
    %476 = vmatpush1.bf16.msra.mxu0 %v366
    %477 = vmatprep.subr.bf16.mxu0 0
    %478 = vmatpush1.bf16.msra.mxu0 %v367
    %479 = vmatprep.subr.bf16.mxu0 0
    %480 = vmatpush1.bf16.msra.mxu0 %v368
    %481 = vmatprep.subr.bf16.mxu0 0
    %482 = vmatpush1.bf16.msra.mxu0 %v369
    %483 = vmatprep.subr.bf16.mxu0 0
    %484 = vmatpush1.bf16.msra.mxu0 %v370
    %485 = vmatprep.subr.bf16.mxu0 0
    %486 = vmatpush1.bf16.msra.mxu0 %v371
    %487 = vmatprep.subr.bf16.mxu0 0
    %488 = vmatpush1.bf16.msra.mxu0 %v372
    %489 = vmatprep.subr.bf16.mxu0 0
    %490 = vmatpush1.bf16.msra.mxu0 %v373
    %491 = vmatprep.subr.bf16.mxu0 0
    %492 = vmatpush1.bf16.msra.mxu0 %v374
    %493 = vmatprep.mubr.bf16.mxu0 %v59
    %494 = vmatmul.mubr.bf16.gmra.mrb[0].mxu0 %v58
    %v495 = vpop.f32.mrb[0].mxu0
    %v496 = vadd.f32 0.0, %v495
    %v497 = vpop.f32.mrb[0].mxu0
    %v498 = vpop.f32.mrb[0].mxu0
    %v499 = vadd.f32 0.0, %v498
    %v500 = vpop.f32.mrb[0].mxu0
    %501 = vdwg.mxu0
    %502 = vmatprep.subr.bf16.mxu0 0
    %503 = vmatpush1.bf16.msra.mxu0 %v375
    %504 = vmatprep.subr.bf16.mxu0 0
    %505 = vmatpush1.bf16.msra.mxu0 %v376
    %506 = vmatprep.subr.bf16.mxu0 0
    %507 = vmatpush1.bf16.msra.mxu0 %v377
    %508 = vmatprep.subr.bf16.mxu0 0
    %509 = vmatpush1.bf16.msra.mxu0 %v378
    %510 = vmatprep.subr.bf16.mxu0 0
    %511 = vmatpush1.bf16.msra.mxu0 %v379
    %512 = vmatprep.subr.bf16.mxu0 0
    %513 = vmatpush1.bf16.msra.mxu0 %v380
    %514 = vmatprep.subr.bf16.mxu0 0
    %515 = vmatpush1.bf16.msra.mxu0 %v381
    %516 = vmatprep.subr.bf16.mxu0 0
    %517 = vmatpush1.bf16.msra.mxu0 %v382
    %518 = vmatprep.subr.bf16.mxu0 0
    %519 = vmatpush1.bf16.msra.mxu0 %v383
    %520 = vmatprep.subr.bf16.mxu0 0
    %521 = vmatpush1.bf16.msra.mxu0 %v384
    %522 = vmatprep.subr.bf16.mxu0 0
    %523 = vmatpush1.bf16.msra.mxu0 %v385
    %524 = vmatprep.subr.bf16.mxu0 0
    %525 = vmatpush1.bf16.msra.mxu0 %v386
    %526 = vmatprep.subr.bf16.mxu0 0
    %527 = vmatpush1.bf16.msra.mxu0 %v387
    %528 = vmatprep.subr.bf16.mxu0 0
    %529 = vmatpush1.bf16.msra.mxu0 %v388
    %530 = vmatprep.subr.bf16.mxu0 0
    %531 = vmatpush1.bf16.msra.mxu0 %v389
    %532 = vmatprep.subr.bf16.mxu0 0
    %533 = vmatpush1.bf16.msra.mxu0 %v390
    %534 = vmatprep.mubr.bf16.mxu0 %v61
    %535 = vmatmul.mubr.bf16.gmra.mrb[0].mxu0 %v60
    %v536 = vpop.f32.mrb[0].mxu0
    %v537 = vadd.f32 %v496, %v536
    %v538 = vpop.f32.mrb[0].mxu0
    %v539 = vpop.f32.mrb[0].mxu0
    %v540 = vadd.f32 %v499, %v539
    %v541 = vpop.f32.mrb[0].mxu0
    %542 = vdwg.mxu0
    %543 = vmatprep.subr.bf16.mxu0 0
    %544 = vmatpush1.bf16.msra.mxu0 %v391
    %545 = vmatprep.subr.bf16.mxu0 0
    %546 = vmatpush1.bf16.msra.mxu0 %v392
    %547 = vmatprep.subr.bf16.mxu0 0
    %548 = vmatpush1.bf16.msra.mxu0 %v393
    %549 = vmatprep.subr.bf16.mxu0 0
    %550 = vmatpush1.bf16.msra.mxu0 %v394
    %551 = vmatprep.subr.bf16.mxu0 0
    %552 = vmatpush1.bf16.msra.mxu0 %v395
    %553 = vmatprep.subr.bf16.mxu0 0
    %554 = vmatpush1.bf16.msra.mxu0 %v396
    %555 = vmatprep.subr.bf16.mxu0 0
    %556 = vmatpush1.bf16.msra.mxu0 %v397
    %557 = vmatprep.subr.bf16.mxu0 0
    %558 = vmatpush1.bf16.msra.mxu0 %v398
    %559 = vmatprep.subr.bf16.mxu0 0
    %560 = vmatpush1.bf16.msra.mxu0 %v399
    %561 = vmatprep.subr.bf16.mxu0 0
    %562 = vmatpush1.bf16.msra.mxu0 %v400
    %563 = vmatprep.subr.bf16.mxu0 0
    %564 = vmatpush1.bf16.msra.mxu0 %v401
    %565 = vmatprep.subr.bf16.mxu0 0
    %566 = vmatpush1.bf16.msra.mxu0 %v402
    %567 = vmatprep.subr.bf16.mxu0 0
    %568 = vmatpush1.bf16.msra.mxu0 %v403
    %569 = vmatprep.subr.bf16.mxu0 0
    %570 = vmatpush1.bf16.msra.mxu0 %v404
    %571 = vmatprep.subr.bf16.mxu0 0
    %572 = vmatpush1.bf16.msra.mxu0 %v405
    %573 = vmatprep.subr.bf16.mxu0 0
    %574 = vmatpush1.bf16.msra.mxu0 %v406
    %575 = vmatprep.mubr.bf16.mxu0 %v63
    %576 = vmatmul.mubr.bf16.gmra.mrb[0].mxu0 %v62
    %v577 = vpop.f32.mrb[0].mxu0
    %v578 = vadd.f32 %v537, %v577
    %v579 = vpop.f32.mrb[0].mxu0
    %v580 = vpop.f32.mrb[0].mxu0
    %v581 = vadd.f32 %v540, %v580
    %v582 = vpop.f32.mrb[0].mxu0
    %583 = vdwg.mxu0
    %584 = vmatprep.subr.bf16.mxu0 0
    %585 = vmatpush1.bf16.msra.mxu0 %v407
    %586 = vmatprep.subr.bf16.mxu0 0
    %587 = vmatpush1.bf16.msra.mxu0 0
    %588 = vmatprep.subr.bf16.mxu0 0
    %589 = vmatpush1.bf16.msra.mxu0 0
    %590 = vmatprep.subr.bf16.mxu0 0
    %591 = vmatpush1.bf16.msra.mxu0 0
    %592 = vmatprep.subr.bf16.mxu0 0
    %593 = vmatpush1.bf16.msra.mxu0 0
    %594 = vmatprep.subr.bf16.mxu0 0
    %595 = vmatpush1.bf16.msra.mxu0 0
    %596 = vmatprep.subr.bf16.mxu0 0
    %597 = vmatpush1.bf16.msra.mxu0 0
    %598 = vmatprep.subr.bf16.mxu0 0
    %599 = vmatpush1.bf16.msra.mxu0 0
    %600 = vmatprep.subr.bf16.mxu0 0
    %601 = vmatpush1.bf16.msra.mxu0 0
    %602 = vmatprep.subr.bf16.mxu0 0
    %603 = vmatpush1.bf16.msra.mxu0 0
    %604 = vmatprep.subr.bf16.mxu0 0
    %605 = vmatpush1.bf16.msra.mxu0 0
    %606 = vmatprep.subr.bf16.mxu0 0
    %607 = vmatpush1.bf16.msra.mxu0 0
    %608 = vmatprep.subr.bf16.mxu0 0
    %609 = vmatpush1.bf16.msra.mxu0 0
    %610 = vmatprep.subr.bf16.mxu0 0
    %611 = vmatpush1.bf16.msra.mxu0 0
    %612 = vmatprep.subr.bf16.mxu0 0
    %613 = vmatpush1.bf16.msra.mxu0 0
    %614 = vmatprep.subr.bf16.mxu0 0
    %615 = vmatpush1.bf16.msra.mxu0 0
    %616 = vmatprep.mubr.bf16.mxu0 0
    %617 = vmatmul.mubr.bf16.gmra.mrb[0].mxu0 %v459
    %v618 = vpop.f32.mrb[0].mxu0
    %v619 = vadd.f32 %v578, %v618
    %v620 = vpop.f32.mrb[0].mxu0
    %v621 = vpop.f32.mrb[0].mxu0
    %v622 = vadd.f32 %v581, %v621
    %v623 = vpop.f32.mrb[0].mxu0
    %624 = vdwg.mxu0
    %v625 = vtanh.pop %v619
    %v626 = vtanh.pop %v622
    %v627 = vpack.c.bf16 %v626, %v625
    %v628 = vld [vmem:[%s2] sm:$0xf]
    %v629 = vld [vmem:[%s2 + $0x4] sm:$0xf]
    %v630 = vld [vmem:[%s2 + $0x8] sm:$0xf]
    %v631 = vld [vmem:[%s2 + $0xc] sm:$0xf]
    %v632 = vld [vmem:[%s2 + $0x10] sm:$0xf]
    %v633 = vld [vmem:[%s2 + $0x14] sm:$0xf]
    %v634 = vld [vmem:[%s2 + $0x18] sm:$0xf]
    %v635 = vld [vmem:[%s2 + $0x1c] sm:$0xf]
    %v636 = vld [vmem:[%s2 + $0x20] sm:$0xf]
    %v637 = vld [vmem:[%s2 + $0x24] sm:$0xf]
    %v638 = vld [vmem:[%s2 + $0x28] sm:$0xf]
    %v639 = vld [vmem:[%s2 + $0x2c] sm:$0xf]
    %v640 = vld [vmem:[%s2 + $0x30] sm:$0xf]
    %v641 = vld [vmem:[%s2 + $0x34] sm:$0xf]
    %v642 = vld [vmem:[%s2 + $0x38] sm:$0xf]
    %v643 = vld [vmem:[%s2 + $0x3c] sm:$0xf]
    %v660 = vunpack.c.l.b16 %v628
    %v661 = vunpack.c.l.b16 %v629
    %v662 = vunpack.c.l.b16 %v630
    %v663 = vunpack.c.l.b16 %v631
    %v664 = vunpack.c.l.b16 %v632
    %v665 = vunpack.c.l.b16 %v633
    %v666 = vunpack.c.l.b16 %v634
    %v667 = vunpack.c.l.b16 %v635
    %v668 = vunpack.c.l.b16 %v636
    %v669 = vunpack.c.l.b16 %v637
    %v670 = vunpack.c.l.b16 %v638
    %v671 = vunpack.c.l.b16 %v639
    %v672 = vunpack.c.l.b16 %v640
    %v673 = vunpack.c.l.b16 %v641
    %v674 = vunpack.c.l.b16 %v642
    %v675 = vunpack.c.l.b16 %v643
    %v676 = vpack.c.b16 %v661, %v660
    %v677 = vpack.c.b16 %v663, %v662
    %v678 = vpack.c.b16 %v665, %v664
    %v679 = vpack.c.b16 %v667, %v666
    %v680 = vpack.c.b16 %v669, %v668
    %v681 = vpack.c.b16 %v671, %v670
    %v682 = vpack.c.b16 %v673, %v672
    %v683 = vpack.c.b16 %v675, %v674
    %692 = vmatprep.subr.bf16.mxu0 0
    %693 = vmatpush1.bf16.msra.mxu0 %v676
    %694 = vmatprep.subr.bf16.mxu0 0
    %695 = vmatpush1.bf16.msra.mxu0 %v677
    %696 = vmatprep.subr.bf16.mxu0 0
    %697 = vmatpush1.bf16.msra.mxu0 %v678
    %698 = vmatprep.subr.bf16.mxu0 0
    %699 = vmatpush1.bf16.msra.mxu0 %v679
    %700 = vmatprep.subr.bf16.mxu0 0
    %701 = vmatpush1.bf16.msra.mxu0 %v680
    %702 = vmatprep.subr.bf16.mxu0 0
    %703 = vmatpush1.bf16.msra.mxu0 %v681
    %704 = vmatprep.subr.bf16.mxu0 0
    %705 = vmatpush1.bf16.msra.mxu0 %v682
    %706 = vmatprep.subr.bf16.mxu0 0
    %707 = vmatpush1.bf16.msra.mxu0 %v683
    %708 = vmatprep.subr.bf16.mxu0 0
    %709 = vmatpush1.bf16.msra.mxu0 0
    %710 = vmatprep.subr.bf16.mxu0 0
    %711 = vmatpush1.bf16.msra.mxu0 0
    %712 = vmatprep.subr.bf16.mxu0 0
    %713 = vmatpush1.bf16.msra.mxu0 0
    %714 = vmatprep.subr.bf16.mxu0 0
    %715 = vmatpush1.bf16.msra.mxu0 0
    %716 = vmatprep.subr.bf16.mxu0 0
    %717 = vmatpush1.bf16.msra.mxu0 0
    %718 = vmatprep.subr.bf16.mxu0 0
    %719 = vmatpush1.bf16.msra.mxu0 0
    %720 = vmatprep.subr.bf16.mxu0 0
    %721 = vmatpush1.bf16.msra.mxu0 0
    %722 = vmatprep.subr.bf16.mxu0 0
    %723 = vmatpush1.bf16.msra.mxu0 0
    %724 = vmatprep.mubr.bf16.mxu0 0
    %725 = vmatmul.mubr.bf16.gmra.mrb[0].mxu0 %v627
    %v726 = vpop.f32.mrb[0].mxu0
    %v727 = vadd.f32 0.0, %v726
    %v728 = vpop.f32.mrb[0].mxu0
    %v729 = vpop.f32.mrb[0].mxu0
    %v730 = vadd.f32 0.0, %v729
    %v731 = vpop.f32.mrb[0].mxu0
    %732 = vdwg.mxu0
    %v733 = vtanh.pop %v727
    %v734 = vtanh.pop %v730
    %v735 = vpack.c.bf16 %v734, %v733
    %v736 = vld [vmem:[%s3] sm:$0xf]
    %v737 = vld [vmem:[%s3 + $0x4] sm:$0xf]
    %v738 = vld [vmem:[%s3 + $0x8] sm:$0xf]
    %v739 = vld [vmem:[%s3 + $0xc] sm:$0xf]
    %v740 = vld [vmem:[%s3 + $0x10] sm:$0xf]
    %v741 = vld [vmem:[%s3 + $0x14] sm:$0xf]
    %v742 = vld [vmem:[%s3 + $0x18] sm:$0xf]
    %v743 = vld [vmem:[%s3 + $0x1c] sm:$0xf]
    %v744 = vld [vmem:[%s3 + $0x20] sm:$0xf]
    %v745 = vld [vmem:[%s3 + $0x24] sm:$0xf]
    %v746 = vld [vmem:[%s3 + $0x28] sm:$0xf]
    %v747 = vld [vmem:[%s3 + $0x2c] sm:$0xf]
    %v748 = vld [vmem:[%s3 + $0x30] sm:$0xf]
    %v749 = vld [vmem:[%s3 + $0x34] sm:$0xf]
    %v750 = vld [vmem:[%s3 + $0x38] sm:$0xf]
    %v751 = vld [vmem:[%s3 + $0x3c] sm:$0xf]
    %v752 = vld [vmem:[%s4] sm:$0x1]
    %v754 = vlaneseq
    %v755 = vshrl.u32 %v754, 7
    %v756 = vsub.s32 0, %v755
    %v757 = vrot.slane %v752, %v756
    %v775 = vunpack.c.l.b16 %v736
    %v776 = vunpack.c.l.b16 %v737
    %v777 = vunpack.c.l.b16 %v738
    %v778 = vunpack.c.l.b16 %v739
    %v779 = vunpack.c.l.b16 %v740
    %v780 = vunpack.c.l.b16 %v741
    %v781 = vunpack.c.l.b16 %v742
    %v782 = vunpack.c.l.b16 %v743
    %v783 = vunpack.c.l.b16 %v744
    %v784 = vunpack.c.l.b16 %v745
    %v785 = vunpack.c.l.b16 %v746
    %v786 = vunpack.c.l.b16 %v747
    %v787 = vunpack.c.l.b16 %v748
    %v788 = vunpack.c.l.b16 %v749
    %v789 = vunpack.c.l.b16 %v750
    %v790 = vunpack.c.l.b16 %v751
    %v791 = vpack.c.b16 %v776, %v775
    %v792 = vpack.c.b16 %v778, %v777
    %v793 = vpack.c.b16 %v780, %v779
    %v794 = vpack.c.b16 %v782, %v781
    %v795 = vpack.c.b16 %v784, %v783
    %v796 = vpack.c.b16 %v786, %v785
    %v797 = vpack.c.b16 %v788, %v787
    %v798 = vpack.c.b16 %v790, %v789
    %807 = vmatprep.subr.bf16.mxu0 0
    %808 = vmatpush1.bf16.msra.mxu0 %v791
    %809 = vmatprep.subr.bf16.mxu0 0
    %810 = vmatpush1.bf16.msra.mxu0 %v792
    %811 = vmatprep.subr.bf16.mxu0 0
    %812 = vmatpush1.bf16.msra.mxu0 %v793
    %813 = vmatprep.subr.bf16.mxu0 0
    %814 = vmatpush1.bf16.msra.mxu0 %v794
    %815 = vmatprep.subr.bf16.mxu0 0
    %816 = vmatpush1.bf16.msra.mxu0 %v795
    %817 = vmatprep.subr.bf16.mxu0 0
    %818 = vmatpush1.bf16.msra.mxu0 %v796
    %819 = vmatprep.subr.bf16.mxu0 0
    %820 = vmatpush1.bf16.msra.mxu0 %v797
    %821 = vmatprep.subr.bf16.mxu0 0
    %822 = vmatpush1.bf16.msra.mxu0 %v798
    %823 = vmatprep.subr.bf16.mxu0 0
    %824 = vmatpush1.bf16.msra.mxu0 0
    %825 = vmatprep.subr.bf16.mxu0 0
    %826 = vmatpush1.bf16.msra.mxu0 0
    %827 = vmatprep.subr.bf16.mxu0 0
    %828 = vmatpush1.bf16.msra.mxu0 0
    %829 = vmatprep.subr.bf16.mxu0 0
    %830 = vmatpush1.bf16.msra.mxu0 0
    %831 = vmatprep.subr.bf16.mxu0 0
    %832 = vmatpush1.bf16.msra.mxu0 0
    %833 = vmatprep.subr.bf16.mxu0 0
    %834 = vmatpush1.bf16.msra.mxu0 0
    %835 = vmatprep.subr.bf16.mxu0 0
    %836 = vmatpush1.bf16.msra.mxu0 0
    %837 = vmatprep.subr.bf16.mxu0 0
    %838 = vmatpush1.bf16.msra.mxu0 0
    %839 = vmatprep.mubr.bf16.mxu0 0
    %840 = vmatmul.mubr.bf16.gmra.mrb[0].mxu0 %v735
    %v841 = vpop.f32.mrb[0].mxu0
    %v842 = vadd.f32 %v757, %v841
    %v843 = vpop.f32.mrb[0].mxu0
    %v844 = vpop.f32.mrb[0].mxu0
    %v845 = vadd.f32 %v757, %v844
    %v846 = vpop.f32.mrb[0].mxu0
    %847 = vdwg.mxu0
    %v848 = vpack.c.bf16 %v845, %v842
    %v849 = vld [vmem:[%s5] sm:$0xf]
    %v850 = vld [vmem:[%s5 + $0x4] sm:$0xf]
    %v851 = vld [vmem:[%s5 + $0x8] sm:$0xf]
    %v852 = vld [vmem:[%s5 + $0xc] sm:$0xf]
    %v853 = vld [vmem:[%s5 + $0x10] sm:$0xf]
    %v854 = vld [vmem:[%s5 + $0x14] sm:$0xf]
    %v855 = vld [vmem:[%s5 + $0x18] sm:$0xf]
    %v856 = vld [vmem:[%s5 + $0x1c] sm:$0xf]
    %v857 = vld [vmem:[%s5 + $0x20] sm:$0xf]
    %v858 = vld [vmem:[%s5 + $0x24] sm:$0xf]
    %v859 = vld [vmem:[%s5 + $0x28] sm:$0xf]
    %v860 = vld [vmem:[%s5 + $0x2c] sm:$0xf]
    %v861 = vld [vmem:[%s5 + $0x30] sm:$0xf]
    %v862 = vld [vmem:[%s5 + $0x34] sm:$0xf]
    %v863 = vld [vmem:[%s5 + $0x38] sm:$0xf]
    %v864 = vld [vmem:[%s5 + $0x3c] sm:$0xf]
    %v881 = vunpack.c.l.b16 %v849
    %v882 = vunpack.c.l.b16 %v850
    %v883 = vunpack.c.l.b16 %v851
    %v884 = vunpack.c.l.b16 %v852
    %v885 = vunpack.c.l.b16 %v853
    %v886 = vunpack.c.l.b16 %v854
    %v887 = vunpack.c.l.b16 %v855
    %v888 = vunpack.c.l.b16 %v856
    %v889 = vunpack.c.l.b16 %v857
    %v890 = vunpack.c.l.b16 %v858
    %v891 = vunpack.c.l.b16 %v859
    %v892 = vunpack.c.l.b16 %v860
    %v893 = vunpack.c.l.b16 %v861
    %v894 = vunpack.c.l.b16 %v862
    %v895 = vunpack.c.l.b16 %v863
    %v896 = vunpack.c.l.b16 %v864
    %v897 = vpack.c.b16 %v882, %v881
    %v898 = vpack.c.b16 %v884, %v883
    %v899 = vpack.c.b16 %v886, %v885
    %v900 = vpack.c.b16 %v888, %v887
    %v901 = vpack.c.b16 %v890, %v889
    %v902 = vpack.c.b16 %v892, %v891
    %v903 = vpack.c.b16 %v894, %v893
    %v904 = vpack.c.b16 %v896, %v895
    %913 = vmatprep.subr.bf16.mxu0 0
    %914 = vmatpush1.bf16.msra.mxu0 %v897
    %915 = vmatprep.subr.bf16.mxu0 0
    %916 = vmatpush1.bf16.msra.mxu0 %v898
    %917 = vmatprep.subr.bf16.mxu0 0
    %918 = vmatpush1.bf16.msra.mxu0 %v899
    %919 = vmatprep.subr.bf16.mxu0 0
    %920 = vmatpush1.bf16.msra.mxu0 %v900
    %921 = vmatprep.subr.bf16.mxu0 0
    %922 = vmatpush1.bf16.msra.mxu0 %v901
    %923 = vmatprep.subr.bf16.mxu0 0
    %924 = vmatpush1.bf16.msra.mxu0 %v902
    %925 = vmatprep.subr.bf16.mxu0 0
    %926 = vmatpush1.bf16.msra.mxu0 %v903
    %927 = vmatprep.subr.bf16.mxu0 0
    %928 = vmatpush1.bf16.msra.mxu0 %v904
    %929 = vmatprep.subr.bf16.mxu0 0
    %930 = vmatpush1.bf16.msra.mxu0 0
    %931 = vmatprep.subr.bf16.mxu0 0
    %932 = vmatpush1.bf16.msra.mxu0 0
    %933 = vmatprep.subr.bf16.mxu0 0
    %934 = vmatpush1.bf16.msra.mxu0 0
    %935 = vmatprep.subr.bf16.mxu0 0
    %936 = vmatpush1.bf16.msra.mxu0 0
    %937 = vmatprep.subr.bf16.mxu0 0
    %938 = vmatpush1.bf16.msra.mxu0 0
    %939 = vmatprep.subr.bf16.mxu0 0
    %940 = vmatpush1.bf16.msra.mxu0 0
    %941 = vmatprep.subr.bf16.mxu0 0
    %942 = vmatpush1.bf16.msra.mxu0 0
    %943 = vmatprep.subr.bf16.mxu0 0
    %944 = vmatpush1.bf16.msra.mxu0 0
    %945 = vmatprep.mubr.bf16.mxu0 0
    %946 = vmatmul.mubr.bf16.gmra.mrb[0].mxu0 %v848
    %v947 = vpop.f32.mrb[0].mxu0
    %v948 = vadd.f32 0.0, %v947
    %v949 = vpop.f32.mrb[0].mxu0
    %v950 = vpop.f32.mrb[0].mxu0
    %v951 = vadd.f32 0.0, %v950
    %v952 = vpop.f32.mrb[0].mxu0
    %953 = vdwg.mxu0
    %v954 = vtanh.pop %v948
    %v955 = vtanh.pop %v951
    %v956 = vpack.c.bf16 %v955, %v954
    %v957 = vld [vmem:[%s6] sm:$0xf]
    %v958 = vld [vmem:[%s6 + $0x4] sm:$0xf]
    %v959 = vld [vmem:[%s6 + $0x8] sm:$0xf]
    %v960 = vld [vmem:[%s6 + $0xc] sm:$0xf]
    %v961 = vld [vmem:[%s6 + $0x10] sm:$0xf]
    %v962 = vld [vmem:[%s6 + $0x14] sm:$0xf]
    %v963 = vld [vmem:[%s6 + $0x18] sm:$0xf]
    %v964 = vld [vmem:[%s6 + $0x1c] sm:$0xf]
    %v965 = vld [vmem:[%s6 + $0x20] sm:$0xf]
    %v966 = vld [vmem:[%s6 + $0x24] sm:$0xf]
    %v967 = vld [vmem:[%s6 + $0x28] sm:$0xf]
    %v968 = vld [vmem:[%s6 + $0x2c] sm:$0xf]
    %v969 = vld [vmem:[%s6 + $0x30] sm:$0xf]
    %v970 = vld [vmem:[%s6 + $0x34] sm:$0xf]
    %v971 = vld [vmem:[%s6 + $0x38] sm:$0xf]
    %v972 = vld [vmem:[%s6 + $0x3c] sm:$0xf]
    %v973 = vld [vmem:[%s7] sm:$0x1]
    %v975 = vlaneseq
    %v976 = vshrl.u32 %v975, 7
    %v977 = vsub.s32 0, %v976
    %v978 = vrot.slane %v973, %v977
    %v996 = vunpack.c.l.b16 %v957
    %v997 = vunpack.c.l.b16 %v958
    %v998 = vunpack.c.l.b16 %v959
    %v999 = vunpack.c.l.b16 %v960
    %v1000 = vunpack.c.l.b16 %v961
    %v1001 = vunpack.c.l.b16 %v962
    %v1002 = vunpack.c.l.b16 %v963
    %v1003 = vunpack.c.l.b16 %v964
    %v1004 = vunpack.c.l.b16 %v965
    %v1005 = vunpack.c.l.b16 %v966
    %v1006 = vunpack.c.l.b16 %v967
    %v1007 = vunpack.c.l.b16 %v968
    %v1008 = vunpack.c.l.b16 %v969
    %v1009 = vunpack.c.l.b16 %v970
    %v1010 = vunpack.c.l.b16 %v971
    %v1011 = vunpack.c.l.b16 %v972
    %v1012 = vpack.c.b16 %v997, %v996
    %v1013 = vpack.c.b16 %v999, %v998
    %v1014 = vpack.c.b16 %v1001, %v1000
    %v1015 = vpack.c.b16 %v1003, %v1002
    %v1016 = vpack.c.b16 %v1005, %v1004
    %v1017 = vpack.c.b16 %v1007, %v1006
    %v1018 = vpack.c.b16 %v1009, %v1008
    %v1019 = vpack.c.b16 %v1011, %v1010
    %1028 = vmatprep.subr.bf16.mxu0 0
    %1029 = vmatpush1.bf16.msra.mxu0 %v1012
    %1030 = vmatprep.subr.bf16.mxu0 0
    %1031 = vmatpush1.bf16.msra.mxu0 %v1013
    %1032 = vmatprep.subr.bf16.mxu0 0
    %1033 = vmatpush1.bf16.msra.mxu0 %v1014
    %1034 = vmatprep.subr.bf16.mxu0 0
    %1035 = vmatpush1.bf16.msra.mxu0 %v1015
    %1036 = vmatprep.subr.bf16.mxu0 0
    %1037 = vmatpush1.bf16.msra.mxu0 %v1016
    %1038 = vmatprep.subr.bf16.mxu0 0
    %1039 = vmatpush1.bf16.msra.mxu0 %v1017
    %1040 = vmatprep.subr.bf16.mxu0 0
    %1041 = vmatpush1.bf16.msra.mxu0 %v1018
    %1042 = vmatprep.subr.bf16.mxu0 0
    %1043 = vmatpush1.bf16.msra.mxu0 %v1019
    %1044 = vmatprep.subr.bf16.mxu0 0
    %1045 = vmatpush1.bf16.msra.mxu0 0
    %1046 = vmatprep.subr.bf16.mxu0 0
    %1047 = vmatpush1.bf16.msra.mxu0 0
    %1048 = vmatprep.subr.bf16.mxu0 0
    %1049 = vmatpush1.bf16.msra.mxu0 0
    %1050 = vmatprep.subr.bf16.mxu0 0
    %1051 = vmatpush1.bf16.msra.mxu0 0
    %1052 = vmatprep.subr.bf16.mxu0 0
    %1053 = vmatpush1.bf16.msra.mxu0 0
    %1054 = vmatprep.subr.bf16.mxu0 0
    %1055 = vmatpush1.bf16.msra.mxu0 0
    %1056 = vmatprep.subr.bf16.mxu0 0
    %1057 = vmatpush1.bf16.msra.mxu0 0
    %1058 = vmatprep.subr.bf16.mxu0 0
    %1059 = vmatpush1.bf16.msra.mxu0 0
    %1060 = vmatprep.mubr.bf16.mxu0 0
    %1061 = vmatmul.mubr.bf16.gmra.mrb[0].mxu0 %v956
    %v1062 = vpop.f32.mrb[0].mxu0
    %v1063 = vadd.f32 %v978, %v1062
    %v1064 = vpop.f32.mrb[0].mxu0
    %v1065 = vpop.f32.mrb[0].mxu0
    %v1066 = vadd.f32 %v978, %v1065
    %v1067 = vpop.f32.mrb[0].mxu0
    %1068 = vdwg.mxu0
    %v1069 = vlaneseq
    %v1070 = vand.u32 %v1069, 127
    %vm1071 = vcmp.lt.s32.totalorder %v1070, 10
    %v1072 = vsel %vm1071, %v1063, -1e+30
    %v1073 = vsel %vm1071, %v1066, -1e+30
    %1074 = vmax.xlane.f32.xlu0 %v1072
    %v1075 = vpop.xlane.xlu0 %1074
    %1076 = vmax.xlane.f32.xlu0 %v1073
    %v1077 = vpop.xlane.xlu0 %1076
    %v1078 = vsub.f32 %v1072, %v1075
    %v1079 = vsub.f32 %v1073, %v1077
    %v1080 = vmul.f32 %v1078, 1.442695
    %v1081 = vpow.pop %v1080
    %v1082 = vmul.f32 %v1079, 1.442695
    %v1083 = vpow.pop %v1082
    %1084 = vadd.xlane.f32.xlu0 %v1081
    %v1085 = vpop.xlane.xlu0 %1084
    %1086 = vadd.xlane.f32.xlu0 %v1083
    %v1087 = vpop.xlane.xlu0 %1086
    %v1088 = vlog2.pop %v1085
    %v1089 = vmul.f32 %v1088, 0.6931472
    %v1090 = vlog2.pop %v1087
    %v1091 = vmul.f32 %v1090, 0.6931472
    %v1092 = vsub.f32 %v1078, %v1089
    %v1093 = vsub.f32 %v1079, %v1091
    %1094 = vst [vmem:[%s8] sm:$0xff] %v1092
    %1095 = vst [vmem:[%s8 + $0x8] sm:$0xff] %v1093
    // Predicated region
    $region38: #{linear_tanh_19_forward.1} parent=1 // pred_check
      _
    $region39: #{linear_tanh_19_forward.1} parent=1 // pred_check_branch
      %1097 = sbr.rel (0) target = $region41
    $region40: #{linear_tanh_19_forward.1} parent=1 // pred_region
      _
    $region41: #{linear_tanh_19_forward.1} parent=1 // pred_fallthru
      _
    // Predicated region
    $region42: #{linear_tanh_19_forward.1} parent=1 // pred_check
      _
    $region43: #{linear_tanh_19_forward.1} parent=1 // pred_check_branch
      %1099 = sbr.rel (0) target = $region45
    $region44: #{linear_tanh_19_forward.1} parent=1 // pred_region
      _
    $region45: #{linear_tanh_19_forward.1} parent=1 // pred_fallthru
      _
    %1100 = vsyncpa [#allocation3], 1

</llo_original>
